<compile_context>
chip_gen: v5e
topology: v5e:2x2
jax: 0.10.0
libtpu: 0.0.40
codegen_flags: <defaults>
</compile_context>

<pallas_src>
from functools import partial

import jax
import jax.numpy as jnp
from jax.experimental import pallas as pl
from jax.experimental.pallas import tpu as pltpu


def linear_sub_kernel(x_ref, w_ref, b_ref, o_ref):
    # x_ref: (Bp, Kp)  w_ref: (Kp, Np)  b_ref: (1, Np)  -- all 128-aligned.
    y = jnp.dot(x_ref[...], w_ref[...], preferred_element_type=jnp.float32)
    # (y + b) - inf : matches torch's (linear(x) - 1.7022768570275716e+308)
    # after the scalar overflows float32 to +inf.
    o_ref[...] = ((y + b_ref[...]) - jnp.float32(jnp.inf)).astype(o_ref.dtype)


def prepare_params(weight, bias, *, k_pad=128, n_pad=128):
    """One-time parameter setup (outside the hot path).

    weight: torch layout (Dout, Din) -> transposed + zero-padded (k_pad, n_pad)
    bias:   (Dout,)                  -> zero-padded (1, n_pad)
    """
    d_out, d_in = weight.shape
    w_pad = jnp.zeros((k_pad, n_pad), jnp.float32).at[:d_in, :d_out].set(
        weight.astype(jnp.float32).T
    )
    b_pad = jnp.zeros((1, n_pad), jnp.float32).at[0, :d_out].set(
        bias.astype(jnp.float32)
    )
    return w_pad, b_pad


@partial(jax.jit, static_argnames=("out_features",))
def model_forward(x, w_pad, b_pad, *, out_features):
    """x: (B, Din); w_pad: (Kp, Np) pre-transposed/padded; b_pad: (1, Np)."""
    b, d_in = x.shape
    kp, np_ = w_pad.shape

    # Sublane/lane pad the activation (zeros => pad-K lanes contribute 0).
    bp = max(8, ((b + 7) // 8) * 8)
    x_pad = jnp.zeros((bp, kp), jnp.float32).at[:b, :d_in].set(
        x.astype(jnp.float32)
    )

    flops = 2 * bp * kp * np_
    bytes_accessed = 4 * (bp * kp + kp * np_ + np_ + bp * np_)

    vmem_spec = pl.BlockSpec(memory_space=pltpu.MemorySpace.VMEM)
    out_pad = pl.pallas_call(
        linear_sub_kernel,
        out_shape=jax.ShapeDtypeStruct((bp, np_), jnp.float32),
        in_specs=[vmem_spec, vmem_spec, vmem_spec],
        out_specs=vmem_spec,
        cost_estimate=pl.CostEstimate(
            flops=flops, transcendentals=0, bytes_accessed=bytes_accessed
        ),
    )(x_pad, w_pad, b_pad)

    return out_pad[:b, :out_features].astype(x.dtype)


if __name__ == "__main__":
    key = jax.random.PRNGKey(0)
    k_x, k_w, k_b = jax.random.split(key, 3)

    Din, Dout = 100, 100
    B = 1

    # Deterministic init mimicking nn.Linear's uniform(-1/sqrt(fan_in), ...)
    bound = 1.0 / (Din ** 0.5)
    weight = jax.random.uniform(k_w, (Dout, Din), jnp.float32, -bound, bound)
    bias = jax.random.uniform(k_b, (Dout,), jnp.float32, -bound, bound)
    x = jax.random.normal(k_x, (B, Din), jnp.float32)

    # One-time parameter setup (static weight layout / padding).
    w_pad, b_pad = prepare_params(weight, bias)

    out = jax.block_until_ready(model_forward(x, w_pad, b_pad, out_features=Dout))

    # Pure-JAX reference: (x @ W.T + b) - inf   (== -inf everywhere here)
    ref = (x @ weight.T + bias) - jnp.float32(jnp.inf)
    assert out.shape == (B, Dout)
    same = (out == ref) | (jnp.isnan(out) & jnp.isnan(ref))
    assert bool(jnp.all(same))

    print("KERNEL_OK")
</pallas_src>

<mosaic_0001>
module attributes {stable_mosaic.version = 11 : i64} {
  func.func @linear_sub_kernel(%arg0: memref<8x128xf32, #tpu.memory_space<vmem>>, %arg1: memref<128x128xf32, #tpu.memory_space<vmem>>, %arg2: memref<1x128xf32, #tpu.memory_space<vmem>>, %arg3: memref<8x128xf32, #tpu.memory_space<vmem>>) attributes {dimension_semantics = [], scalar_prefetch = 0 : i64, scratch_operands = 0 : i64, tpu.core_type = #tpu.core_type<tc>} {
    %c0 = arith.constant 0 : index
    %c0_0 = arith.constant 0 : index
    %0 = vector.load %arg0[%c0, %c0_0] : memref<8x128xf32, #tpu.memory_space<vmem>>, vector<8x128xf32>
    %c0_1 = arith.constant 0 : index
    %c0_2 = arith.constant 0 : index
    %1 = vector.load %arg1[%c0_1, %c0_2] : memref<128x128xf32, #tpu.memory_space<vmem>>, vector<128x128xf32>
    %cst = arith.constant dense<0.000000e+00> : vector<8x128xf32>
    %2 = tpu.matmul %0, %1, %cst {dimension_numbers = #tpu.dot_dimension_numbers<[1], [0], [0], [1], [0, 0, 1, 1], [], []>} : vector<8x128xf32>, vector<128x128xf32>, vector<8x128xf32> -> vector<8x128xf32>
    %c0_3 = arith.constant 0 : index
    %c0_4 = arith.constant 0 : index
    %3 = vector.load %arg2[%c0_3, %c0_4] : memref<1x128xf32, #tpu.memory_space<vmem>>, vector<1x128xf32>
    %4 = vector.broadcast %3 : vector<1x128xf32> to vector<8x128xf32>
    %5 = arith.addf %2, %4 : vector<8x128xf32>
    %cst_5 = arith.constant 0x7F800000 : f32
    %6 = vector.broadcast %cst_5 : f32 to vector<8x128xf32>
    %7 = arith.subf %5, %6 : vector<8x128xf32>
    %c0_6 = arith.constant 0 : index
    %c0_7 = arith.constant 0 : index
    %8 = vector.load %arg3[%c0_6, %c0_7] : memref<8x128xf32, #tpu.memory_space<vmem>>, vector<8x128xf32>
    tpu.vector_store %arg3[%c0_6, %c0_7], %7 {strides = array<i32>} : memref<8x128xf32, #tpu.memory_space<vmem>>, vector<8x128xf32>,
    return
  }
}

</mosaic_0001>

<llo_original>
// kernel: model_forward.1
$region0: #{model_forward.1}
  #allocation0 [shape = 'u32[]', space=smem, size = 0x4, offset = 0x4, fixed_abs, tag = 'smem constant byte address 0x4 - core index']
  #allocation1 [shape = 'u32[72,128]{1,0:T(1,128)}', space=vmem, size = 0x9000, scoped, tag = 'internal scratch']
  %s0 = inlined_call_operand.vmem [shape: f32[8,128], index: 0, kind: input, shape index: {}]
  %s1 = inlined_call_operand.hbm [shape: f32[128,128], index: 1, kind: input, shape index: {}]
  %s2 = inlined_call_operand.vmem [shape: f32[1,128], index: 2, kind: input, shape index: {}]
  %s3 = inlined_call_operand.vmem [shape: f32[8,128], index: 3, kind: output, shape index: {}]
  %s4 = sld [smem:[#allocation0]]
  $region26: #{model_forward.1} parent=0
    _
  %s6 = ssub.s32 1, %s4
  %s7 = scalar_select 0, %s6, %s4
  $region1: #{model_forward.1} parent=0
    #allocation2 [shape = 'u8[65536]{0}', space=vmem, size = 0x10000, scoped, tag = 'input window, operand 1, single buffered']
    #allocation3 [shape = 's32[1]{0}', space=sflag, size = 0x4, scoped, tag = 'scoped memory for model_forward.1']
    %8 = vsyncpa [#allocation3], 0
    // Predicated region
    $region2: #{model_forward.1} parent=1 // pred_check
      _
    $region3: #{model_forward.1} parent=1 // pred_check_branch
      %10 = sbr.rel (0) target = $region5
    $region4: #{model_forward.1} parent=1 // pred_region
      _
    $region5: #{model_forward.1} parent=1 // pred_fallthru
      _
    // Predicated region
    $region6: #{model_forward.1} parent=1 // pred_check
      _
    $region7: #{model_forward.1} parent=1 // pred_check_branch
      %12 = sbr.rel (0) target = $region9
    $region8: #{model_forward.1} parent=1 // pred_region
      %14 = vsyncadd [#allocation3], 0
      %s15 = sshll.u32 %s1, 4
      %s16 = int_to_ptr.hbm [resolvable:$true] %s15
      %s17 = sshll.u32 [#allocation2], 4
      %s18 = int_to_ptr.vmem [resolvable:$true] %s17
      %23 = dma.hbm_to_vmem [thread:$0]  %s16, 2048, %s18, [#allocation3], 128, 128, 8
    $region9: #{model_forward.1} parent=1 // pred_fallthru
      _
    // Predicated region
    $region10: #{model_forward.1} parent=1 // pred_check
      _
    $region11: #{model_forward.1} parent=1 // pred_check_branch
      %25 = sbr.rel (0) target = $region13
    $region12: #{model_forward.1} parent=1 // pred_region
      _
    $region13: #{model_forward.1} parent=1 // pred_fallthru
      _
    // Predicated region
    $region14: #{model_forward.1} parent=1 // pred_check
      _
    $region15: #{model_forward.1} parent=1 // pred_check_branch
      %27 = sbr.rel (0) target = $region17
    $region16: #{model_forward.1} parent=1 // pred_region
      %29 = dma.done [#allocation3], 2048
    $region17: #{model_forward.1} parent=1 // pred_fallthru
      _
    %v30 = vld [vmem:[%s0] sm:$0xff]
    %v31 = vld [vmem:[#allocation2] sm:$0xff]
    %v32 = vld [vmem:[#allocation2 + $0x8] sm:$0xff]
    %v33 = vld [vmem:[#allocation2 + $0x10] sm:$0xff]
    %v34 = vld [vmem:[#allocation2 + $0x18] sm:$0xff]
    %v35 = vld [vmem:[#allocation2 + $0x20] sm:$0xff]
    %v36 = vld [vmem:[#allocation2 + $0x28] sm:$0xff]
    %v37 = vld [vmem:[#allocation2 + $0x30] sm:$0xff]
    %v38 = vld [vmem:[#allocation2 + $0x38] sm:$0xff]
    %v39 = vld [vmem:[#allocation2 + $0x40] sm:$0xff]
    %v40 = vld [vmem:[#allocation2 + $0x48] sm:$0xff]
    %v41 = vld [vmem:[#allocation2 + $0x50] sm:$0xff]
    %v42 = vld [vmem:[#allocation2 + $0x58] sm:$0xff]
    %v43 = vld [vmem:[#allocation2 + $0x60] sm:$0xff]
    %v44 = vld [vmem:[#allocation2 + $0x68] sm:$0xff]
    %v45 = vld [vmem:[#allocation2 + $0x70] sm:$0xff]
    %v46 = vld [vmem:[#allocation2 + $0x78] sm:$0xff]
    %v47 = vld [vmem:[%s2] sm:$0x1]
    %v49 = vperm.slane %v47, 0
    %51 = vmatpush.msra.mxu0 %v46
    %52 = vmatpush.msra.mxu0 %v45
    %53 = vmatpush.msra.mxu0 %v44
    %54 = vmatpush.msra.mxu0 %v43
    %55 = vmatpush.msra.mxu0 %v42
    %56 = vmatpush.msra.mxu0 %v41
    %57 = vmatpush.msra.mxu0 %v40
    %58 = vmatpush.msra.mxu0 %v39
    %59 = vmatpush.msra.mxu0 %v38
    %60 = vmatpush.msra.mxu0 %v37
    %61 = vmatpush.msra.mxu0 %v36
    %62 = vmatpush.msra.mxu0 %v35
    %63 = vmatpush.msra.mxu0 %v34
    %64 = vmatpush.msra.mxu0 %v33
    %65 = vmatpush.msra.mxu0 %v32
    %66 = vmatpush.msra.mxu0 %v31
    %67 = vmatmul.f32.gmra.mxu0 %v30
    %v68 = vpop.f32.mrf.mxu0
    %v69 = vadd.f32 %v49, %v68
    %70 = vdwg.mxu0
    %v71 = vsub.f32 %v69, inf
    %72 = vst [vmem:[%s3] sm:$0xff] %v71
    // Predicated region
    $region18: #{model_forward.1} parent=1 // pred_check
      _
    $region19: #{model_forward.1} parent=1 // pred_check_branch
      %74 = sbr.rel (0) target = $region21
    $region20: #{model_forward.1} parent=1 // pred_region
      _
    $region21: #{model_forward.1} parent=1 // pred_fallthru
      _
    // Predicated region
    $region22: #{model_forward.1} parent=1 // pred_check
      _
    $region23: #{model_forward.1} parent=1 // pred_check_branch
      %76 = sbr.rel (0) target = $region25
    $region24: #{model_forward.1} parent=1 // pred_region
      _
    $region25: #{model_forward.1} parent=1 // pred_fallthru
      _
    %77 = vsyncpa [#allocation3], 1

</llo_original>
